<compile_context>
chip_gen: v6e
topology: v6e:2x2x1
jax: 0.10.0
libtpu: 0.0.40
codegen_flags: <defaults>
</compile_context>

<pallas_src>
import jax
import jax.numpy as jnp
from jax.experimental import pallas as pl
from jax.experimental.pallas import tpu as pltpu

_LANE = 128
_SUBLANE = 8

# Each of the 16 soft gates expressed in the basis [1, a1, a2, a1*a2].
_GATE_COEFFS = jnp.array(
    [
        [0.0, 0.0, 0.0, 0.0],    # 0 : FALSE
        [0.0, 0.0, 0.0, 1.0],    # 1 : AND
        [0.0, 1.0, 0.0, -1.0],   # 2 : A AND NOT B
        [0.0, 1.0, 0.0, 0.0],    # 3 : A
        [0.0, 0.0, 1.0, -1.0],   # 4 : NOT A AND B
        [0.0, 0.0, 1.0, 0.0],    # 5 : B
        [0.0, 1.0, 1.0, -2.0],   # 6 : XOR
        [0.0, 1.0, 1.0, -1.0],   # 7 : OR
        [1.0, -1.0, -1.0, 1.0],  # 8 : NOR
        [1.0, -1.0, -1.0, 2.0],  # 9 : XNOR
        [1.0, 0.0, -1.0, 0.0],   # 10: NOT B
        [1.0, 0.0, -1.0, 1.0],   # 11: A OR NOT B
        [1.0, -1.0, 0.0, 0.0],   # 12: NOT A
        [1.0, -1.0, 0.0, 1.0],   # 13: NOT A OR B
        [1.0, 0.0, 0.0, -1.0],   # 14: NAND
        [1.0, 0.0, 0.0, 0.0],    # 15: TRUE
    ],
    dtype=jnp.float32,
)


def logic_neuron_kernel(idx_ref, coef_ref, x1_ref, x2_ref, out_ref):
    """idx_ref:  SMEM (2,)  int32  (scalar prefetch, consumed by index_maps)
       coef_ref: SMEM (4,)  f32    [c0, c1, c2, c3]
       x1/x2:    VMEM (1, rows, 128) f32 blocks of the two gathered features
       out_ref:  VMEM (rows, 128) f32
    """
    del idx_ref  # only used in the index_maps
    a1 = x1_ref[0]                       # (rows, 128)
    a2 = x2_ref[0]
    out_ref[...] = (coef_ref[0]
                    + coef_ref[1] * a1
                    + coef_ref[2] * a2
                    + coef_ref[3] * (a1 * a2))


def _round_up(x, m):
    return ((x + m - 1) // m) * m


def differentiable_logic_neuron(inputs, weights, input_indices, *, block_rows=None):
    """Forward pass matching DifferentiableLogicNeuron.

    inputs:        (B, F) float32
    weights:       (16,)  float32
    input_indices: length-2 int sequence / array (jit-traceable)
    returns:       (B,)   float32
    """
    inputs = inputs.astype(jnp.float32)
    b, f = inputs.shape

    probs = jax.nn.softmax(weights.astype(jnp.float32), axis=0)   # (16,)
    coeffs = probs @ _GATE_COEFFS                                 # (4,)
    idx = jnp.asarray(input_indices, dtype=jnp.int32).reshape(2)  # (2,)

    # Lane/sublane-dense, feature-major layout: (F, rows, 128).
    rows_needed = -(-b // _LANE)                       # ceil(B / 128)
    if block_rows is None:
        block_rows = min(512, _round_up(max(rows_needed, 1), _SUBLANE))
    block_rows = max(_SUBLANE, _round_up(block_rows, _SUBLANE))
    rows_pad = _round_up(max(rows_needed, 1), block_rows)
    b_pad = rows_pad * _LANE
    num_blocks = rows_pad // block_rows

    # TODO(synk): in a real logic-gate-network layer the inputs should be kept
    # feature-major in HBM (and many neurons batched per call) so this
    # transpose/pad is done once for the whole layer, not per neuron.
    feat = jnp.transpose(inputs)                       # (F, B)
    feat = jnp.pad(feat, ((0, 0), (0, b_pad - b)))     # (F, B_pad)
    feat = feat.reshape(f, rows_pad, _LANE)            # (F, rows_pad, 128)

    out = pl.pallas_call(
        logic_neuron_kernel,
        out_shape=jax.ShapeDtypeStruct((rows_pad, _LANE), jnp.float32),
        grid_spec=pltpu.PrefetchScalarGridSpec(
            num_scalar_prefetch=1,                     # idx -> SMEM, feeds index_maps
            grid=(num_blocks,),
            in_specs=[
                pl.BlockSpec(memory_space=pltpu.MemorySpace.SMEM),          # coeffs (4,)
                pl.BlockSpec((1, block_rows, _LANE),
                             lambda i, idx: (idx[0], i, 0)),                # a1 rows
                pl.BlockSpec((1, block_rows, _LANE),
                             lambda i, idx: (idx[1], i, 0)),                # a2 rows
            ],
            out_specs=pl.BlockSpec((block_rows, _LANE), lambda i, idx: (i, 0)),
        ),
        compiler_params=pltpu.CompilerParams(
            dimension_semantics=("parallel",)),
    )(idx, coeffs, feat, feat)

    return out.reshape(-1)[:b]


def _reference(inputs, weights, input_indices):
    """Plain-JAX reference mirroring the PyTorch forward exactly."""
    a1 = inputs[:, input_indices[0]]
    a2 = inputs[:, input_indices[1]]
    ops = jnp.stack(
        [
            jnp.zeros_like(a1), a1 * a2, a1 * (1 - a2), a1, (1 - a1) * a2, a2,
            a1 + a2 - 2 * a1 * a2, a1 + a2 - a1 * a2,
            1 - (a1 + a2 - a1 * a2), 1 - (a1 + a2 - 2 * a1 * a2),
            1 - a2, 1 - a2 + a1 * a2, 1 - a1, 1 - a1 + a1 * a2,
            1 - a1 * a2, jnp.ones_like(a1),
        ],
        axis=1,
    )
    probs = jax.nn.softmax(weights, axis=0)
    return (probs * ops).sum(axis=1)


if __name__ == "__main__":
    key = jax.random.PRNGKey(0)
    k_w, k_x, k_x2 = jax.random.split(key, 3)

    n_ops = 16
    weights = jax.random.normal(k_w, (n_ops,), dtype=jnp.float32)

    # Small case matching the module's toy usage (batch=8, 4 features).
    batch, n_features = 8, 4
    input_indices = (0, 2)
    inputs = jax.random.uniform(k_x, (batch, n_features), dtype=jnp.float32)

    out = differentiable_logic_neuron(inputs, weights, input_indices)
    out = jax.block_until_ready(out)
    ref = _reference(inputs, weights, input_indices)
    assert out.shape == (batch,)
    assert jnp.allclose(out, ref, atol=1e-5, rtol=1e-5), (out, ref)

    # Modest second case exercising multiple grid blocks + batch padding.
    batch2, n_features2 = 2000, 6
    input_indices2 = (5, 1)
    inputs2 = jax.random.uniform(k_x2, (batch2, n_features2), dtype=jnp.float32)
    out2 = differentiable_logic_neuron(inputs2, weights, input_indices2,
                                       block_rows=8)
    out2 = jax.block_until_ready(out2)
    ref2 = _reference(inputs2, weights, jnp.asarray(input_indices2))
    assert out2.shape == (batch2,)
    assert jnp.allclose(out2, ref2, atol=1e-5, rtol=1e-5)

    print("KERNEL_OK")
</pallas_src>

<mosaic_0001>
module attributes {stable_mosaic.version = 11 : i64} {
  func.func @logic_neuron_kernel(%arg0: i32, %arg1: memref<2xi32, #tpu.memory_space<smem>>, %arg2: memref<4xf32, #tpu.memory_space<smem>>, %arg3: memref<1x8x128xf32, #tpu.memory_space<vmem>>, %arg4: memref<1x8x128xf32, #tpu.memory_space<vmem>>, %arg5: memref<8x128xf32, #tpu.memory_space<vmem>>) attributes {dimension_semantics = [#tpu.dimension_semantics<parallel>], iteration_bounds = array<i64: 1>, scalar_prefetch = 1 : i64, scratch_operands = 0 : i64, tpu.core_type = #tpu.core_type<tc>, window_params = [{transform_indices = @transform_0, window_bounds = array<i64: 4>}, {transform_indices = @transform_1, window_bounds = array<i64: 1, 8, 128>}, {transform_indices = @transform_2, window_bounds = array<i64: 1, 8, 128>}, {transform_indices = @transform_3, window_bounds = array<i64: 8, 128>}]} {
    %c0 = arith.constant 0 : index
    %c0_0 = arith.constant 0 : index
    %c0_1 = arith.constant 0 : index
    %0 = vector.load %arg3[%c0, %c0_0, %c0_1] : memref<1x8x128xf32, #tpu.memory_space<vmem>>, vector<1x8x128xf32>
    %1 = vector.shape_cast %0 : vector<1x8x128xf32> to vector<8x128xf32>
    %c0_2 = arith.constant 0 : index
    %c0_3 = arith.constant 0 : index
    %c0_4 = arith.constant 0 : index
    %2 = vector.load %arg4[%c0_2, %c0_3, %c0_4] : memref<1x8x128xf32, #tpu.memory_space<vmem>>, vector<1x8x128xf32>
    %3 = vector.shape_cast %2 : vector<1x8x128xf32> to vector<8x128xf32>
    %c0_5 = arith.constant 0 : index
    %4 = memref.load %arg2[%c0_5] : memref<4xf32, #tpu.memory_space<smem>>
    %c1 = arith.constant 1 : index
    %5 = memref.load %arg2[%c1] : memref<4xf32, #tpu.memory_space<smem>>
    %6 = vector.broadcast %5 : f32 to vector<8x128xf32>
    %7 = arith.mulf %6, %1 : vector<8x128xf32>
    %8 = vector.broadcast %4 : f32 to vector<8x128xf32>
    %9 = arith.addf %8, %7 : vector<8x128xf32>
    %c2 = arith.constant 2 : index
    %10 = memref.load %arg2[%c2] : memref<4xf32, #tpu.memory_space<smem>>
    %11 = vector.broadcast %10 : f32 to vector<8x128xf32>
    %12 = arith.mulf %11, %3 : vector<8x128xf32>
    %13 = arith.addf %9, %12 : vector<8x128xf32>
    %c3 = arith.constant 3 : index
    %14 = memref.load %arg2[%c3] : memref<4xf32, #tpu.memory_space<smem>>
    %15 = arith.mulf %1, %3 : vector<8x128xf32>
    %16 = vector.broadcast %14 : f32 to vector<8x128xf32>
    %17 = arith.mulf %16, %15 : vector<8x128xf32>
    %18 = arith.addf %13, %17 : vector<8x128xf32>
    %c0_6 = arith.constant 0 : index
    %c0_7 = arith.constant 0 : index
    %19 = vector.load %arg5[%c0_6, %c0_7] : memref<8x128xf32, #tpu.memory_space<vmem>>, vector<8x128xf32>
    tpu.vector_store %arg5[%c0_6, %c0_7], %18 {strides = array<i32>} : memref<8x128xf32, #tpu.memory_space<vmem>>, vector<8x128xf32>,
    return
  }
  func.func @transform_0(%arg0: i32, %arg1: memref<2xi32, #tpu.memory_space<smem>>) -> i32 {
    %c0_i32 = arith.constant 0 : i32
    %c0_i32_0 = arith.constant 0 : i32
    return %c0_i32 : i32
  }
  func.func @transform_1(%arg0: i32, %arg1: memref<2xi32, #tpu.memory_space<smem>>) -> (i32, i32, i32) {
    %c0 = arith.constant 0 : index
    %0 = memref.load %arg1[%c0] : memref<2xi32, #tpu.memory_space<smem>>
    %c0_i32 = arith.constant 0 : i32
    %c0_i32_0 = arith.constant 0 : i32
    return %0, %arg0, %c0_i32 : i32, i32, i32
  }
  func.func @transform_2(%arg0: i32, %arg1: memref<2xi32, #tpu.memory_space<smem>>) -> (i32, i32, i32) {
    %c1 = arith.constant 1 : index
    %0 = memref.load %arg1[%c1] : memref<2xi32, #tpu.memory_space<smem>>
    %c0_i32 = arith.constant 0 : i32
    %c0_i32_0 = arith.constant 0 : i32
    return %0, %arg0, %c0_i32 : i32, i32, i32
  }
  func.func @transform_3(%arg0: i32, %arg1: memref<2xi32, #tpu.memory_space<smem>>) -> (i32, i32) {
    %c0_i32 = arith.constant 0 : i32
    %c0_i32_0 = arith.constant 0 : i32
    return %arg0, %c0_i32 : i32, i32
  }
}

</mosaic_0001>

<llo_original>
// kernel: tpu_custom_call.1
$region0: #{tpu_custom_call.1}
  #allocation0 [shape = 'u32[]', space=smem, size = 0x4, offset = 0x4, fixed_abs, tag = 'smem constant byte address 0x4 - core index']
  #allocation1 [shape = 'u32[144,128]{1,0:T(1,128)}', space=vmem, size = 0x12000, scoped, tag = 'internal scratch']
  #allocation2 [shape = 's32[1]{0}', space=sflag, size = 0x4, scoped, tag = 'scoped memory for tpu_custom_call.1']
  #allocation3 [shape = 'u8[512]{0}', space=smem, size = 0x200, scoped, tag = 'prefetched SMEM operand 0']
  %s0 = inlined_call_operand.hbm [shape: s32[2], index: 0, kind: input, shape index: {}]
  %s1 = inlined_call_operand.vmem [shape: f32[4], index: 1, kind: input, shape index: {}]
  %s2 = inlined_call_operand.hbm [shape: f32[4,8,128], index: 2, kind: input, shape index: {}]
  %s3 = inlined_call_operand.hbm [shape: f32[4,8,128], index: 3, kind: input, shape index: {}]
  %s4 = inlined_call_operand.hbm [shape: f32[8,128], index: 4, kind: output, shape index: {}]
  %s5 = sld [smem:[#allocation0]]
  $region34: #{tpu_custom_call.1} parent=0
    _
  %s7 = ssub.s32 1, %s5
  %s8 = scalar_select 0, %s7, %s5
  %10 = dma.hbm_to_smem %s0, 16, [#allocation3], [#allocation2]
  %11 = dma.done [#allocation2], 16
  %12 = sfence
  $region1: #{tpu_custom_call.1} parent=0
    #allocation4 [shape = 'u8[512]{0}', space=smem, size = 0x200, scoped, tag = 'input window, operand 1, single buffered']
    #allocation5 [shape = 's32[1]{0}', space=sflag, size = 0x4, scoped, tag = 'scoped memory for tpu_custom_call.1']
    #allocation6 [shape = 's32[1]{0}', space=sflag, size = 0x4, scoped, tag = 'scoped memory for tpu_custom_call.1']
    #allocation7 [shape = 's32[1]{0}', space=sflag, size = 0x4, scoped, tag = 'scoped memory for tpu_custom_call.1']
    #allocation8 [shape = 'u8[4096]{0}', space=vmem, size = 0x1000, scoped, tag = 'input window, operand 2, single buffered']
    #allocation9 [shape = 'u8[4096]{0}', space=vmem, size = 0x1000, scoped, tag = 'input window, operand 3, single buffered']
    #allocation10 [shape = 's32[1]{0}', space=sflag, size = 0x4, scoped, tag = 'scoped memory for tpu_custom_call.1']
    #allocation11 [shape = 'u8[4096]{0}', space=vmem, size = 0x1000, scoped, tag = 'output window, operand 0, single buffered']
    %13 = vsyncpa [#allocation7], 0
    %14 = vsyncpa [#allocation5], 0
    %15 = vsyncpa [#allocation10], 0
    %16 = vsyncpa [#allocation6], 0
    // Predicated region
    $region2: #{tpu_custom_call.1} parent=1 // pred_check
      _
    $region3: #{tpu_custom_call.1} parent=1 // pred_check_branch
      %18 = sbr.rel (0) target = $region5
    $region4: #{tpu_custom_call.1} parent=1 // pred_region
      %s20 = ssub.s32 16, 16
      %21 = vsyncadd [#allocation7], %s20
      %s23 = sshll.u32 %s1, 4
      %s24 = int_to_ptr.vmem [resolvable:$true] %s23
      %26 = dma.vmem_to_smem %s24, 16, [#allocation4], [#allocation7]
    $region5: #{tpu_custom_call.1} parent=1 // pred_fallthru
      _
    // Predicated region
    $region6: #{tpu_custom_call.1} parent=1 // pred_check
      _
    $region7: #{tpu_custom_call.1} parent=1 // pred_check_branch
      %28 = sbr.rel (0) target = $region9
    $region8: #{tpu_custom_call.1} parent=1 // pred_region
      %s29 = sld [smem:[#allocation3]]
      %s31 = ssub.s32 128, 128
      %32 = vsyncadd [#allocation5], %s31
      %s33 = smul.addr %s29, 128
      %s34 = scalar_lea.hbm %s2, %s33
      %s36 = sshll.u32 [#allocation8], 4
      %s37 = int_to_ptr.vmem [resolvable:$true] %s36
      %39 = dma.hbm_to_vmem [thread:$0]  %s34, 128, %s37, [#allocation5]
    $region9: #{tpu_custom_call.1} parent=1 // pred_fallthru
      _
    // Predicated region
    $region10: #{tpu_custom_call.1} parent=1 // pred_check
      _
    $region11: #{tpu_custom_call.1} parent=1 // pred_check_branch
      %41 = sbr.rel (0) target = $region13
    $region12: #{tpu_custom_call.1} parent=1 // pred_region
      %s42 = sld [smem:[#allocation3 + $0x1]]
      %s44 = ssub.s32 128, 128
      %45 = vsyncadd [#allocation10], %s44
      %s46 = smul.addr %s42, 128
      %s47 = scalar_lea.hbm %s3, %s46
      %s49 = sshll.u32 [#allocation9], 4
      %s50 = int_to_ptr.vmem [resolvable:$true] %s49
      %52 = dma.hbm_to_vmem [thread:$0]  %s47, 128, %s50, [#allocation10]
    $region13: #{tpu_custom_call.1} parent=1 // pred_fallthru
      _
    // Predicated region
    $region14: #{tpu_custom_call.1} parent=1 // pred_check
      _
    $region15: #{tpu_custom_call.1} parent=1 // pred_check_branch
      %54 = sbr.rel (0) target = $region17
    $region16: #{tpu_custom_call.1} parent=1 // pred_region
      %55 = dma.done [#allocation7], 16
    $region17: #{tpu_custom_call.1} parent=1 // pred_fallthru
      _
    // Predicated region
    $region18: #{tpu_custom_call.1} parent=1 // pred_check
      _
    $region19: #{tpu_custom_call.1} parent=1 // pred_check_branch
      %57 = sbr.rel (0) target = $region21
    $region20: #{tpu_custom_call.1} parent=1 // pred_region
      %58 = dma.done [#allocation5], 128
    $region21: #{tpu_custom_call.1} parent=1 // pred_fallthru
      _
    // Predicated region
    $region22: #{tpu_custom_call.1} parent=1 // pred_check
      _
    $region23: #{tpu_custom_call.1} parent=1 // pred_check_branch
      %60 = sbr.rel (0) target = $region25
    $region24: #{tpu_custom_call.1} parent=1 // pred_region
      %61 = dma.done [#allocation10], 128
    $region25: #{tpu_custom_call.1} parent=1 // pred_fallthru
      _
    %62 = sfence
    %s63 = sld [smem:[#allocation3]]
    %s64 = sld [smem:[#allocation3 + $0x1]]
    %v65 = vld [vmem:[#allocation8] sm:$0xff]
    %v66 = vld [vmem:[#allocation9] sm:$0xff]
    %s67 = sld [smem:[#allocation4]]
    %s68 = sld [smem:[#allocation4 + $0x1]]
    %v69 = vstv %s68
    %v70 = vmul.f32 %v69, %v65
    %v71 = vstv %s67
    %v72 = vadd.f32 %v71, %v70
    %s73 = sld [smem:[#allocation4 + $0x2]]
    %v74 = vstv %s73
    %v75 = vmul.f32 %v74, %v66
    %v76 = vadd.f32 %v72, %v75
    %s77 = sld [smem:[#allocation4 + $0x3]]
    %v78 = vmul.f32 %v65, %v66
    %v79 = vstv %s77
    %v80 = vmul.f32 %v79, %v78
    %v81 = vadd.f32 %v76, %v80
    %82 = vst [vmem:[#allocation11] sm:$0xff] %v81
    // Predicated region
    $region26: #{tpu_custom_call.1} parent=1 // pred_check
      _
    $region27: #{tpu_custom_call.1} parent=1 // pred_check_branch
      %84 = sbr.rel (0) target = $region29
    $region28: #{tpu_custom_call.1} parent=1 // pred_region
      %s86 = ssub.s32 128, 128
      %87 = vsyncadd [#allocation6], %s86
      %s89 = sshll.u32 [#allocation11], 4
      %s90 = int_to_ptr.vmem [resolvable:$true] %s89
      %92 = dma.vmem_to_hbm [thread:$0]  %s90, 128, %s4, [#allocation6]
    $region29: #{tpu_custom_call.1} parent=1 // pred_fallthru
      _
    // Predicated region
    $region30: #{tpu_custom_call.1} parent=1 // pred_check
      _
    $region31: #{tpu_custom_call.1} parent=1 // pred_check_branch
      %94 = sbr.rel (0) target = $region33
    $region32: #{tpu_custom_call.1} parent=1 // pred_region
      %95 = dma.done [#allocation6], 128
    $region33: #{tpu_custom_call.1} parent=1 // pred_fallthru
      _
    %96 = vsyncpa [#allocation5], 1
    %97 = vsyncpa [#allocation10], 1
    %98 = vsyncpa [#allocation6], 1
    %99 = vsyncpa [#allocation7], 1

</llo_original>
